<compile_context>
chip_gen: v6e
topology: v6e:2x2x1
jax: 0.10.0
libtpu: 0.0.40
codegen_flags: <defaults>
</compile_context>

<pallas_src>
import jax
import jax.numpy as jnp
from jax.experimental import pallas as pl
from jax.experimental.pallas import tpu as pltpu

IN_F, H_F, OUT_F = 12, 7, 1


def mlp_kernel(x_ref, w0_ref, b0_ref, w1_ref, b1_ref, w2_ref, b2_ref, o_ref):
    # x_ref: [12, TB]  (features on sublanes, batch on lanes)
    x = x_ref[...]
    # dense0 -> ReLU : [7,12] @ [12,TB] -> [7,TB]
    h0 = jnp.dot(w0_ref[...], x, preferred_element_type=jnp.float32) + b0_ref[...]
    h0 = jnp.maximum(h0, 0.0)
    # dense1 -> ReLU : [7,7] @ [7,TB] -> [7,TB]
    h1 = jnp.dot(w1_ref[...], h0, preferred_element_type=jnp.float32) + b1_ref[...]
    h1 = jnp.maximum(h1, 0.0)
    # dense2 -> Sigmoid : [1,7] @ [7,TB] -> [1,TB]
    z = jnp.dot(w2_ref[...], h1, preferred_element_type=jnp.float32) + b2_ref[...]
    # exp goes to the EUP; exact reciprocal keeps bit-level agreement with the
    # reference (kernel is HBM-bound, so this costs nothing measurable).
    o_ref[...] = pl.reciprocal(1.0 + jnp.exp(-z), approx=False)


def classificador_forward(x, params, *, tb_max=8192):
    """x: [B, 12] float32.  params in PyTorch layout: W [out,in], b [out,1]."""
    w0, b0, w1, b1, w2, b2 = params
    B = x.shape[0]

    # Lane-align batch and pick a tile size (<= tb_max, multiple of 128).
    Bp = pl.cdiv(B, 128) * 128
    tb = min(tb_max, Bp)
    Bp = pl.cdiv(Bp, tb) * tb          # make padded batch a multiple of the tile
    grid = (Bp // tb,)

    # Transpose + zero-pad so batch is on the lane axis: [12, Bp].
    xT = jnp.pad(x, ((0, Bp - B), (0, 0))).T

    def resident(shape):
        # Full-array block, same block index every grid step -> stays in VMEM.
        return pl.BlockSpec(shape, lambda i: (0, 0))

    out = pl.pallas_call(
        mlp_kernel,
        out_shape=jax.ShapeDtypeStruct((OUT_F, Bp), jnp.float32),
        grid=grid,
        in_specs=[
            pl.BlockSpec((IN_F, tb), lambda i: (0, i)),   # streamed batch tiles
            resident(w0.shape), resident(b0.shape),
            resident(w1.shape), resident(b1.shape),
            resident(w2.shape), resident(b2.shape),
        ],
        out_specs=pl.BlockSpec((OUT_F, tb), lambda i: (0, i)),
        compiler_params=pltpu.CompilerParams(
            dimension_semantics=("parallel",),
        ),
    )(xT, w0, b0, w1, b1, w2, b2)

    # Drop the pad region and return in the PyTorch convention [B, 1].
    return out[:, :B].T


def init_params(key):
    """Deterministic init matching the PyTorch module's shapes/init.

    dense0: Linear(12, 7)  weight ~ N(0, 0.05), bias ~ U(-1/sqrt(12), 1/sqrt(12))
    dense1: Linear(7, 7)   weight ~ N(0, 0.05), bias ~ U(-1/sqrt(7),  1/sqrt(7))
    dense2: Linear(7, 1)   PyTorch default: W, b ~ U(-1/sqrt(7), 1/sqrt(7))
    Weights kept in PyTorch layout [out, in]; biases as columns [out, 1].
    """
    k0w, k0b, k1w, k1b, k2w, k2b = jax.random.split(key, 6)
    w0 = 0.05 * jax.random.normal(k0w, (H_F, IN_F), jnp.float32)
    b0 = jax.random.uniform(k0b, (H_F, 1), jnp.float32,
                            minval=-1.0 / jnp.sqrt(12.0), maxval=1.0 / jnp.sqrt(12.0))
    w1 = 0.05 * jax.random.normal(k1w, (H_F, H_F), jnp.float32)
    b1 = jax.random.uniform(k1b, (H_F, 1), jnp.float32,
                            minval=-1.0 / jnp.sqrt(7.0), maxval=1.0 / jnp.sqrt(7.0))
    w2 = jax.random.uniform(k2w, (OUT_F, H_F), jnp.float32,
                            minval=-1.0 / jnp.sqrt(7.0), maxval=1.0 / jnp.sqrt(7.0))
    b2 = jax.random.uniform(k2b, (OUT_F, 1), jnp.float32,
                            minval=-1.0 / jnp.sqrt(7.0), maxval=1.0 / jnp.sqrt(7.0))
    return w0, b0, w1, b1, w2, b2


def reference_forward(x, params):
    w0, b0, w1, b1, w2, b2 = params
    h = jnp.maximum(x @ w0.T + b0.T, 0.0)
    h = jnp.maximum(h @ w1.T + b1.T, 0.0)
    z = h @ w2.T + b2.T
    return 1.0 / (1.0 + jnp.exp(-z))


if __name__ == "__main__":
    key = jax.random.PRNGKey(0)
    kx, kp = jax.random.split(key)
    params = init_params(kp)

    # Small primary test (single grid step after padding to 128 lanes).
    B = 8
    x = jax.random.normal(kx, (B, IN_F), jnp.float32)
    out = classificador_forward(x, params)
    jax.block_until_ready(out)
    ref = reference_forward(x, params)
    assert out.shape == (B, 1)
    assert jnp.allclose(out, ref, atol=1e-5, rtol=1e-5)

    # Exercise multi-step grid + non-multiple-of-tile tail padding.
    B2 = 300
    x2 = jax.random.normal(kx, (B2, IN_F), jnp.float32)
    out2 = classificador_forward(x2, params, tb_max=128)
    jax.block_until_ready(out2)
    ref2 = reference_forward(x2, params)
    assert out2.shape == (B2, 1)
    assert jnp.allclose(out2, ref2, atol=1e-5, rtol=1e-5)

    print("KERNEL_OK")
</pallas_src>

<mosaic_0001>
module attributes {stable_mosaic.version = 11 : i64} {
  func.func @mlp_kernel(%arg0: i32, %arg1: memref<12x128xf32, #tpu.memory_space<vmem>>, %arg2: memref<7x12xf32, #tpu.memory_space<vmem>>, %arg3: memref<7x1xf32, #tpu.memory_space<vmem>>, %arg4: memref<7x7xf32, #tpu.memory_space<vmem>>, %arg5: memref<7x1xf32, #tpu.memory_space<vmem>>, %arg6: memref<1x7xf32, #tpu.memory_space<vmem>>, %arg7: memref<1x1xf32, #tpu.memory_space<vmem>>, %arg8: memref<1x128xf32, #tpu.memory_space<vmem>>) attributes {dimension_semantics = [#tpu.dimension_semantics<parallel>], iteration_bounds = array<i64: 1>, scalar_prefetch = 0 : i64, scratch_operands = 0 : i64, tpu.core_type = #tpu.core_type<tc>, window_params = [{transform_indices = @transform_0, window_bounds = array<i64: 12, 128>}, {pipeline_mode = #tpu.pipeline_mode<synchronous>, transform_indices = @transform_1, window_bounds = array<i64: 7, 12>}, {pipeline_mode = #tpu.pipeline_mode<synchronous>, transform_indices = @transform_2, window_bounds = array<i64: 7, 1>}, {pipeline_mode = #tpu.pipeline_mode<synchronous>, transform_indices = @transform_3, window_bounds = array<i64: 7, 7>}, {pipeline_mode = #tpu.pipeline_mode<synchronous>, transform_indices = @transform_4, window_bounds = array<i64: 7, 1>}, {pipeline_mode = #tpu.pipeline_mode<synchronous>, transform_indices = @transform_5, window_bounds = array<i64: 1, 7>}, {pipeline_mode = #tpu.pipeline_mode<synchronous>, transform_indices = @transform_6, window_bounds = array<i64: 1, 1>}, {transform_indices = @transform_7, window_bounds = array<i64: 1, 128>}]} {
    %c0 = arith.constant 0 : index
    %c0_0 = arith.constant 0 : index
    %0 = vector.load %arg1[%c0, %c0_0] : memref<12x128xf32, #tpu.memory_space<vmem>>, vector<12x128xf32>
    %c0_1 = arith.constant 0 : index
    %c0_2 = arith.constant 0 : index
    %1 = vector.load %arg2[%c0_1, %c0_2] : memref<7x12xf32, #tpu.memory_space<vmem>>, vector<7x12xf32>
    %cst = arith.constant dense<0.000000e+00> : vector<7x128xf32>
    %2 = tpu.matmul %1, %0, %cst {dimension_numbers = #tpu.dot_dimension_numbers<[1], [0], [0], [1], [0, 0, 1, 1], [], []>} : vector<7x12xf32>, vector<12x128xf32>, vector<7x128xf32> -> vector<7x128xf32>
    %c0_3 = arith.constant 0 : index
    %c0_4 = arith.constant 0 : index
    %3 = vector.load %arg3[%c0_3, %c0_4] : memref<7x1xf32, #tpu.memory_space<vmem>>, vector<7x1xf32>
    %4 = vector.broadcast %3 : vector<7x1xf32> to vector<7x128xf32>
    %5 = arith.addf %2, %4 : vector<7x128xf32>
    %cst_5 = arith.constant 0.000000e+00 : f32
    %6 = vector.broadcast %cst_5 : f32 to vector<7x128xf32>
    %7 = arith.maximumf %5, %6 : vector<7x128xf32>
    %c0_6 = arith.constant 0 : index
    %c0_7 = arith.constant 0 : index
    %8 = vector.load %arg4[%c0_6, %c0_7] : memref<7x7xf32, #tpu.memory_space<vmem>>, vector<7x7xf32>
    %cst_8 = arith.constant dense<0.000000e+00> : vector<7x128xf32>
    %9 = tpu.matmul %8, %7, %cst_8 {dimension_numbers = #tpu.dot_dimension_numbers<[1], [0], [0], [1], [0, 0, 1, 1], [], []>} : vector<7x7xf32>, vector<7x128xf32>, vector<7x128xf32> -> vector<7x128xf32>
    %c0_9 = arith.constant 0 : index
    %c0_10 = arith.constant 0 : index
    %10 = vector.load %arg5[%c0_9, %c0_10] : memref<7x1xf32, #tpu.memory_space<vmem>>, vector<7x1xf32>
    %11 = vector.broadcast %10 : vector<7x1xf32> to vector<7x128xf32>
    %12 = arith.addf %9, %11 : vector<7x128xf32>
    %cst_11 = arith.constant 0.000000e+00 : f32
    %13 = vector.broadcast %cst_11 : f32 to vector<7x128xf32>
    %14 = arith.maximumf %12, %13 : vector<7x128xf32>
    %c0_12 = arith.constant 0 : index
    %c0_13 = arith.constant 0 : index
    %15 = vector.load %arg6[%c0_12, %c0_13] : memref<1x7xf32, #tpu.memory_space<vmem>>, vector<1x7xf32>
    %cst_14 = arith.constant dense<0.000000e+00> : vector<1x128xf32>
    %16 = tpu.matmul %15, %14, %cst_14 {dimension_numbers = #tpu.dot_dimension_numbers<[1], [0], [0], [1], [0, 0, 1, 1], [], []>} : vector<1x7xf32>, vector<7x128xf32>, vector<1x128xf32> -> vector<1x128xf32>
    %c0_15 = arith.constant 0 : index
    %c0_16 = arith.constant 0 : index
    %17 = vector.load %arg7[%c0_15, %c0_16] : memref<1x1xf32, #tpu.memory_space<vmem>>, vector<1x1xf32>
    %18 = vector.broadcast %17 : vector<1x1xf32> to vector<1x128xf32>
    %19 = arith.addf %16, %18 : vector<1x128xf32>
    %cst_17 = arith.constant 0.000000e+00 : f32
    %20 = vector.broadcast %cst_17 : f32 to vector<1x128xf32>
    %21 = arith.subf %20, %19 : vector<1x128xf32>
    %22 = math.exp %21 : vector<1x128xf32>
    %cst_18 = arith.constant 1.000000e+00 : f32
    %23 = vector.broadcast %cst_18 : f32 to vector<1x128xf32>
    %24 = arith.addf %23, %22 : vector<1x128xf32>
    %25 = tpu.reciprocal %24 : vector<1x128xf32> -> vector<1x128xf32>
    %c0_19 = arith.constant 0 : index
    %c0_20 = arith.constant 0 : index
    %26 = vector.load %arg8[%c0_19, %c0_20] : memref<1x128xf32, #tpu.memory_space<vmem>>, vector<1x128xf32>
    tpu.vector_store %arg8[%c0_19, %c0_20], %25 {strides = array<i32>} : memref<1x128xf32, #tpu.memory_space<vmem>>, vector<1x128xf32>,
    return
  }
  func.func @transform_0(%arg0: i32) -> (i32, i32) {
    %c0_i32 = arith.constant 0 : i32
    %c0_i32_0 = arith.constant 0 : i32
    return %c0_i32, %arg0 : i32, i32
  }
  func.func @transform_1(%arg0: i32) -> (i32, i32) {
    %c0_i32 = arith.constant 0 : i32
    %c0_i32_0 = arith.constant 0 : i32
    %c0_i32_1 = arith.constant 0 : i32
    return %c0_i32, %c0_i32_0 : i32, i32
  }
  func.func @transform_2(%arg0: i32) -> (i32, i32) {
    %c0_i32 = arith.constant 0 : i32
    %c0_i32_0 = arith.constant 0 : i32
    %c0_i32_1 = arith.constant 0 : i32
    return %c0_i32, %c0_i32_0 : i32, i32
  }
  func.func @transform_3(%arg0: i32) -> (i32, i32) {
    %c0_i32 = arith.constant 0 : i32
    %c0_i32_0 = arith.constant 0 : i32
    %c0_i32_1 = arith.constant 0 : i32
    return %c0_i32, %c0_i32_0 : i32, i32
  }
  func.func @transform_4(%arg0: i32) -> (i32, i32) {
    %c0_i32 = arith.constant 0 : i32
    %c0_i32_0 = arith.constant 0 : i32
    %c0_i32_1 = arith.constant 0 : i32
    return %c0_i32, %c0_i32_0 : i32, i32
  }
  func.func @transform_5(%arg0: i32) -> (i32, i32) {
    %c0_i32 = arith.constant 0 : i32
    %c0_i32_0 = arith.constant 0 : i32
    %c0_i32_1 = arith.constant 0 : i32
    return %c0_i32, %c0_i32_0 : i32, i32
  }
  func.func @transform_6(%arg0: i32) -> (i32, i32) {
    %c0_i32 = arith.constant 0 : i32
    %c0_i32_0 = arith.constant 0 : i32
    %c0_i32_1 = arith.constant 0 : i32
    return %c0_i32, %c0_i32_0 : i32, i32
  }
  func.func @transform_7(%arg0: i32) -> (i32, i32) {
    %c0_i32 = arith.constant 0 : i32
    %c0_i32_0 = arith.constant 0 : i32
    return %c0_i32, %arg0 : i32, i32
  }
}

</mosaic_0001>

<llo_original>
// kernel: tpu_custom_call.1
$region0: #{tpu_custom_call.1}
  #allocation0 [shape = 'u32[]', space=smem, size = 0x4, offset = 0x4, fixed_abs, tag = 'smem constant byte address 0x4 - core index']
  #allocation1 [shape = 'u32[144,128]{1,0:T(1,128)}', space=vmem, size = 0x12000, scoped, tag = 'internal scratch']
  #allocation2 [shape = 'f32[1,1]{1,0:T(1,128)S(1)}', space=vmem, size = 0x200, scoped, tag = 'scoped memory for tpu_custom_call.1']
  %s0 = inlined_call_operand.vmem [shape: f32[12,128], index: 0, kind: input, shape index: {}]
  %s1 = inlined_call_operand.hbm [shape: f32[7,12], index: 1, kind: input, shape index: {}]
  %s2 = inlined_call_operand.vmem [shape: f32[7,1], index: 2, kind: input, shape index: {}]
  %s3 = inlined_call_operand.vmem [shape: f32[7,7], index: 3, kind: input, shape index: {}]
  %s4 = inlined_call_operand.vmem [shape: f32[7,1], index: 4, kind: input, shape index: {}]
  %s5 = inlined_call_operand.vmem [shape: f32[1,7], index: 5, kind: input, shape index: {}]
  %s6 = inlined_call_operand.<no memory space> [shape: f32[1,1], index: 6, kind: input, shape index: {}]
  %s7 = inlined_call_operand.hbm [shape: f32[1,128], index: 7, kind: output, shape index: {}]
  %s8 = sld [smem:[#allocation0]]
  $region42: #{tpu_custom_call.1} parent=0
    _
  %s10 = ssub.s32 1, %s8
  %s11 = scalar_select 0, %s10, %s8
  %v12 = vstv %s6
  %13 = vst [vmem:[#allocation2] sm:$0x1] %v12
  $region1: #{tpu_custom_call.1} parent=0
    #allocation3 [shape = 'u8[4096]{0}', space=vmem, size = 0x1000, scoped, tag = 'input window, operand 1, single buffered']
    #allocation4 [shape = 's32[1]{0}', space=sflag, size = 0x4, scoped, tag = 'scoped memory for tpu_custom_call.1']
    #allocation5 [shape = 's32[1]{0}', space=sflag, size = 0x4, scoped, tag = 'scoped memory for tpu_custom_call.1']
    #allocation6 [shape = 'u8[512]{0}', space=vmem, size = 0x400, scoped, tag = 'output window, operand 0, single buffered']
    %14 = vsyncpa [#allocation4], 0
    %15 = vsyncpa [#allocation5], 0
    // Predicated region
    $region2: #{tpu_custom_call.1} parent=1 // pred_check
      _
    $region3: #{tpu_custom_call.1} parent=1 // pred_check_branch
      %17 = sbr.rel (0) target = $region5
    $region4: #{tpu_custom_call.1} parent=1 // pred_region
      _
    $region5: #{tpu_custom_call.1} parent=1 // pred_fallthru
      _
    // Predicated region
    $region6: #{tpu_custom_call.1} parent=1 // pred_check
      _
    $region7: #{tpu_custom_call.1} parent=1 // pred_check_branch
      %19 = sbr.rel (0) target = $region9
    $region8: #{tpu_custom_call.1} parent=1 // pred_region
      %s21 = ssub.s32 128, 128
      %22 = vsyncadd [#allocation4], %s21
      %s24 = sshll.u32 [#allocation3], 4
      %s25 = int_to_ptr.vmem [resolvable:$true] %s24
      %27 = dma.hbm_to_vmem [thread:$0]  %s1, 128, %s25, [#allocation4]
    $region9: #{tpu_custom_call.1} parent=1 // pred_fallthru
      _
    // Predicated region
    $region10: #{tpu_custom_call.1} parent=1 // pred_check
      _
    $region11: #{tpu_custom_call.1} parent=1 // pred_check_branch
      %29 = sbr.rel (0) target = $region13
    $region12: #{tpu_custom_call.1} parent=1 // pred_region
      _
    $region13: #{tpu_custom_call.1} parent=1 // pred_fallthru
      _
    // Predicated region
    $region14: #{tpu_custom_call.1} parent=1 // pred_check
      _
    $region15: #{tpu_custom_call.1} parent=1 // pred_check_branch
      %31 = sbr.rel (0) target = $region17
    $region16: #{tpu_custom_call.1} parent=1 // pred_region
      _
    $region17: #{tpu_custom_call.1} parent=1 // pred_fallthru
      _
    // Predicated region
    $region18: #{tpu_custom_call.1} parent=1 // pred_check
      _
    $region19: #{tpu_custom_call.1} parent=1 // pred_check_branch
      %33 = sbr.rel (0) target = $region21
    $region20: #{tpu_custom_call.1} parent=1 // pred_region
      _
    $region21: #{tpu_custom_call.1} parent=1 // pred_fallthru
      _
    // Predicated region
    $region22: #{tpu_custom_call.1} parent=1 // pred_check
      _
    $region23: #{tpu_custom_call.1} parent=1 // pred_check_branch
      %35 = sbr.rel (0) target = $region25
    $region24: #{tpu_custom_call.1} parent=1 // pred_region
      _
    $region25: #{tpu_custom_call.1} parent=1 // pred_fallthru
      _
    // Predicated region
    $region26: #{tpu_custom_call.1} parent=1 // pred_check
      _
    $region27: #{tpu_custom_call.1} parent=1 // pred_check_branch
      %37 = sbr.rel (0) target = $region29
    $region28: #{tpu_custom_call.1} parent=1 // pred_region
      _
    $region29: #{tpu_custom_call.1} parent=1 // pred_fallthru
      _
    // Predicated region
    $region30: #{tpu_custom_call.1} parent=1 // pred_check
      _
    $region31: #{tpu_custom_call.1} parent=1 // pred_check_branch
      %39 = sbr.rel (0) target = $region33
    $region32: #{tpu_custom_call.1} parent=1 // pred_region
      %40 = dma.done [#allocation4], 128
    $region33: #{tpu_custom_call.1} parent=1 // pred_fallthru
      _
    %v41 = vld [vmem:[%s0] sm:$0xff]
    %v42 = vld [vmem:[%s0 + $0x8] sm:$0xf]
    %v43 = vld [vmem:[#allocation3] sm:$0x7f]
    %v44 = vld [vmem:[%s2] sm:$0x7f]
    %46 = vset.pattern.permute.xlu0 0
    %47 = vperm.xlu0 %46, %v44
    %v48 = vpop.permute.xlu0 %47
    %vm50 = vcmask 97280
    %v52 = vsel %vm50, %v43, 0
    %vm54 = vcmask 1043456
    %v56 = vsel %vm54, %v42, 0
    %58 = vmatprep.subr.mxu0 0.0
    %59 = vmatpush1.msra.mxu0 0.0
    %60 = vmatprep.subr.mxu0 0.0
    %61 = vmatpush1.msra.mxu0 0.0
    %62 = vmatprep.subr.mxu0 0.0
    %63 = vmatpush1.msra.mxu0 0.0
    %64 = vmatprep.subr.mxu0 0.0
    %65 = vmatpush1.msra.mxu0 0.0
    %66 = vmatprep.subr.mxu0 0.0
    %67 = vmatpush1.msra.mxu0 0.0
    %68 = vmatprep.subr.mxu0 0.0
    %69 = vmatpush1.msra.mxu0 0.0
    %70 = vmatprep.subr.mxu0 0.0
    %71 = vmatpush1.msra.mxu0 0.0
    %72 = vmatprep.subr.mxu0 0.0
    %73 = vmatpush1.msra.mxu0 0.0
    %74 = vmatprep.subr.mxu0 0.0
    %75 = vmatpush1.msra.mxu0 0.0
    %76 = vmatprep.subr.mxu0 0.0
    %77 = vmatpush1.msra.mxu0 0.0
    %78 = vmatprep.subr.mxu0 0.0
    %79 = vmatpush1.msra.mxu0 0.0
    %80 = vmatprep.subr.mxu0 0.0
    %81 = vmatpush1.msra.mxu0 0.0
    %82 = vmatprep.subr.mxu0 0.0
    %83 = vmatpush1.msra.mxu0 0.0
    %84 = vmatprep.subr.mxu0 0.0
    %85 = vmatpush1.msra.mxu0 0.0
    %86 = vmatprep.subr.mxu0 0.0
    %87 = vmatpush1.msra.mxu0 %v56
    %88 = vmatprep.subr.mxu0 0.0
    %89 = vmatpush1.msra.mxu0 %v41
    %90 = vmatprep.subr.mxu0 0.0
    %91 = vmatpush2.msra.mxu0 0.0
    %92 = vmatprep.subr.mxu0 0.0
    %93 = vmatpush2.msra.mxu0 0.0
    %94 = vmatprep.subr.mxu0 0.0
    %95 = vmatpush2.msra.mxu0 0.0
    %96 = vmatprep.subr.mxu0 0.0
    %97 = vmatpush2.msra.mxu0 0.0
    %98 = vmatprep.subr.mxu0 0.0
    %99 = vmatpush2.msra.mxu0 0.0
    %100 = vmatprep.subr.mxu0 0.0
    %101 = vmatpush2.msra.mxu0 0.0
    %102 = vmatprep.subr.mxu0 0.0
    %103 = vmatpush2.msra.mxu0 0.0
    %104 = vmatprep.subr.mxu0 0.0
    %105 = vmatpush2.msra.mxu0 0.0
    %106 = vmatprep.subr.mxu0 0.0
    %107 = vmatpush2.msra.mxu0 0.0
    %108 = vmatprep.subr.mxu0 0.0
    %109 = vmatpush2.msra.mxu0 0.0
    %110 = vmatprep.subr.mxu0 0.0
    %111 = vmatpush2.msra.mxu0 0.0
    %112 = vmatprep.subr.mxu0 0.0
    %113 = vmatpush2.msra.mxu0 0.0
    %114 = vmatprep.subr.mxu0 0.0
    %115 = vmatpush2.msra.mxu0 0.0
    %116 = vmatprep.subr.mxu0 0.0
    %117 = vmatpush2.msra.mxu0 0.0
    %118 = vmatprep.subr.mxu0 0.0
    %119 = vmatpush2.msra.mxu0 0.0
    %120 = vmatprep.subr.mxu0 0.0
    %121 = vmatpush2.msra.mxu0 0.0
    %122 = vmatprep.mubr.f32.mxu0 0.0
    %123 = vmatmul.mubr.f32.gmra.mxu0 %v52
    %v124 = vpop.f32.mrf.mxu0
    %v125 = vadd.f32 %v48, %v124
    %v126 = vpop.f32.mrf.mxu0
    %127 = vdwg.mxu0
    %v128 = vmax.f32 %v125, 0.0
    %v129 = vld [vmem:[%s3] sm:$0x7f]
    %v130 = vld [vmem:[%s4] sm:$0x7f]
    %132 = vset.pattern.permute.xlu0 0
    %133 = vperm.xlu0 %132, %v130
    %v134 = vpop.permute.xlu0 %133
    %vm136 = vcmask 56320
    %v138 = vsel %vm136, %v129, 0
    %vm140 = vcmask 1046528
    %v142 = vsel %vm140, %v128, 0
    %144 = vmatprep.subr.mxu0 0.0
    %145 = vmatpush1.msra.mxu0 0.0
    %146 = vmatprep.subr.mxu0 0.0
    %147 = vmatpush1.msra.mxu0 0.0
    %148 = vmatprep.subr.mxu0 0.0
    %149 = vmatpush1.msra.mxu0 0.0
    %150 = vmatprep.subr.mxu0 0.0
    %151 = vmatpush1.msra.mxu0 0.0
    %152 = vmatprep.subr.mxu0 0.0
    %153 = vmatpush1.msra.mxu0 0.0
    %154 = vmatprep.subr.mxu0 0.0
    %155 = vmatpush1.msra.mxu0 0.0
    %156 = vmatprep.subr.mxu0 0.0
    %157 = vmatpush1.msra.mxu0 0.0
    %158 = vmatprep.subr.mxu0 0.0
    %159 = vmatpush1.msra.mxu0 0.0
    %160 = vmatprep.subr.mxu0 0.0
    %161 = vmatpush1.msra.mxu0 0.0
    %162 = vmatprep.subr.mxu0 0.0
    %163 = vmatpush1.msra.mxu0 0.0
    %164 = vmatprep.subr.mxu0 0.0
    %165 = vmatpush1.msra.mxu0 0.0
    %166 = vmatprep.subr.mxu0 0.0
    %167 = vmatpush1.msra.mxu0 0.0
    %168 = vmatprep.subr.mxu0 0.0
    %169 = vmatpush1.msra.mxu0 0.0
    %170 = vmatprep.subr.mxu0 0.0
    %171 = vmatpush1.msra.mxu0 0.0
    %172 = vmatprep.subr.mxu0 0.0
    %173 = vmatpush1.msra.mxu0 0.0
    %174 = vmatprep.subr.mxu0 0.0
    %175 = vmatpush1.msra.mxu0 %v142
    %176 = vmatprep.subr.mxu0 0.0
    %177 = vmatpush2.msra.mxu0 0.0
    %178 = vmatprep.subr.mxu0 0.0
    %179 = vmatpush2.msra.mxu0 0.0
    %180 = vmatprep.subr.mxu0 0.0
    %181 = vmatpush2.msra.mxu0 0.0
    %182 = vmatprep.subr.mxu0 0.0
    %183 = vmatpush2.msra.mxu0 0.0
    %184 = vmatprep.subr.mxu0 0.0
    %185 = vmatpush2.msra.mxu0 0.0
    %186 = vmatprep.subr.mxu0 0.0
    %187 = vmatpush2.msra.mxu0 0.0
    %188 = vmatprep.subr.mxu0 0.0
    %189 = vmatpush2.msra.mxu0 0.0
    %190 = vmatprep.subr.mxu0 0.0
    %191 = vmatpush2.msra.mxu0 0.0
    %192 = vmatprep.subr.mxu0 0.0
    %193 = vmatpush2.msra.mxu0 0.0
    %194 = vmatprep.subr.mxu0 0.0
    %195 = vmatpush2.msra.mxu0 0.0
    %196 = vmatprep.subr.mxu0 0.0
    %197 = vmatpush2.msra.mxu0 0.0
    %198 = vmatprep.subr.mxu0 0.0
    %199 = vmatpush2.msra.mxu0 0.0
    %200 = vmatprep.subr.mxu0 0.0
    %201 = vmatpush2.msra.mxu0 0.0
    %202 = vmatprep.subr.mxu0 0.0
    %203 = vmatpush2.msra.mxu0 0.0
    %204 = vmatprep.subr.mxu0 0.0
    %205 = vmatpush2.msra.mxu0 0.0
    %206 = vmatprep.subr.mxu0 0.0
    %207 = vmatpush2.msra.mxu0 0.0
    %208 = vmatprep.mubr.f32.mxu0 0.0
    %209 = vmatmul.mubr.f32.gmra.mxu0 %v138
    %v210 = vpop.f32.mrf.mxu0
    %v211 = vadd.f32 %v134, %v210
    %v212 = vpop.f32.mrf.mxu0
    %213 = vdwg.mxu0
    %v214 = vmax.f32 %v211, 0.0
    %v215 = vld [vmem:[%s5] sm:$0x1]
    %v216 = vld [vmem:[#allocation2] sm:$0x1]
    %218 = vset.pattern.permute.xlu0 0
    %219 = vperm.xlu0 %218, %v216
    %v220 = vpop.permute.xlu0 %219
    %v222 = vlaneseq
    %v223 = vshrl.u32 %v222, 7
    %v224 = vsub.s32 0, %v223
    %v225 = vrot.slane %v220, %v224
    %v227 = vsel %vm136, %v215, 0
    %v230 = vsel %vm140, %v214, 0
    %232 = vmatprep.subr.mxu0 0.0
    %233 = vmatpush1.msra.mxu0 0.0
    %234 = vmatprep.subr.mxu0 0.0
    %235 = vmatpush1.msra.mxu0 0.0
    %236 = vmatprep.subr.mxu0 0.0
    %237 = vmatpush1.msra.mxu0 0.0
    %238 = vmatprep.subr.mxu0 0.0
    %239 = vmatpush1.msra.mxu0 0.0
    %240 = vmatprep.subr.mxu0 0.0
    %241 = vmatpush1.msra.mxu0 0.0
    %242 = vmatprep.subr.mxu0 0.0
    %243 = vmatpush1.msra.mxu0 0.0
    %244 = vmatprep.subr.mxu0 0.0
    %245 = vmatpush1.msra.mxu0 0.0
    %246 = vmatprep.subr.mxu0 0.0
    %247 = vmatpush1.msra.mxu0 0.0
    %248 = vmatprep.subr.mxu0 0.0
    %249 = vmatpush1.msra.mxu0 0.0
    %250 = vmatprep.subr.mxu0 0.0
    %251 = vmatpush1.msra.mxu0 0.0
    %252 = vmatprep.subr.mxu0 0.0
    %253 = vmatpush1.msra.mxu0 0.0
    %254 = vmatprep.subr.mxu0 0.0
    %255 = vmatpush1.msra.mxu0 0.0
    %256 = vmatprep.subr.mxu0 0.0
    %257 = vmatpush1.msra.mxu0 0.0
    %258 = vmatprep.subr.mxu0 0.0
    %259 = vmatpush1.msra.mxu0 0.0
    %260 = vmatprep.subr.mxu0 0.0
    %261 = vmatpush1.msra.mxu0 0.0
    %262 = vmatprep.subr.mxu0 0.0
    %263 = vmatpush1.msra.mxu0 %v230
    %264 = vmatprep.subr.mxu0 0.0
    %265 = vmatpush2.msra.mxu0 0.0
    %266 = vmatprep.subr.mxu0 0.0
    %267 = vmatpush2.msra.mxu0 0.0
    %268 = vmatprep.subr.mxu0 0.0
    %269 = vmatpush2.msra.mxu0 0.0
    %270 = vmatprep.subr.mxu0 0.0
    %271 = vmatpush2.msra.mxu0 0.0
    %272 = vmatprep.subr.mxu0 0.0
    %273 = vmatpush2.msra.mxu0 0.0
    %274 = vmatprep.subr.mxu0 0.0
    %275 = vmatpush2.msra.mxu0 0.0
    %276 = vmatprep.subr.mxu0 0.0
    %277 = vmatpush2.msra.mxu0 0.0
    %278 = vmatprep.subr.mxu0 0.0
    %279 = vmatpush2.msra.mxu0 0.0
    %280 = vmatprep.subr.mxu0 0.0
    %281 = vmatpush2.msra.mxu0 0.0
    %282 = vmatprep.subr.mxu0 0.0
    %283 = vmatpush2.msra.mxu0 0.0
    %284 = vmatprep.subr.mxu0 0.0
    %285 = vmatpush2.msra.mxu0 0.0
    %286 = vmatprep.subr.mxu0 0.0
    %287 = vmatpush2.msra.mxu0 0.0
    %288 = vmatprep.subr.mxu0 0.0
    %289 = vmatpush2.msra.mxu0 0.0
    %290 = vmatprep.subr.mxu0 0.0
    %291 = vmatpush2.msra.mxu0 0.0
    %292 = vmatprep.subr.mxu0 0.0
    %293 = vmatpush2.msra.mxu0 0.0
    %294 = vmatprep.subr.mxu0 0.0
    %295 = vmatpush2.msra.mxu0 0.0
    %296 = vmatprep.mubr.f32.mxu0 0.0
    %297 = vmatmul.mubr.f32.gmra.mxu0 %v227
    %v298 = vpop.f32.mrf.mxu0
    %v299 = vadd.f32 %v225, %v298
    %v300 = vpop.f32.mrf.mxu0
    %301 = vdwg.mxu0
    %v302 = vsub.f32 0.0, %v299
    %v303 = vmul.f32 %v302, 1.442695
    %v304 = vpow.pop %v303
    %v305 = vadd.f32 %v304, 1.0
    %v306 = vrcp.pop %v305
    %307 = vst [vmem:[#allocation6] sm:$0x1] %v306
    // Predicated region
    $region34: #{tpu_custom_call.1} parent=1 // pred_check
      _
    $region35: #{tpu_custom_call.1} parent=1 // pred_check_branch
      %309 = sbr.rel (0) target = $region37
    $region36: #{tpu_custom_call.1} parent=1 // pred_region
      %s311 = ssub.s32 16, 16
      %312 = vsyncadd [#allocation5], %s311
      %s314 = sshll.u32 [#allocation6], 4
      %s315 = int_to_ptr.vmem [resolvable:$true] %s314
      %317 = dma.vmem_to_hbm [thread:$0]  %s315, 16, %s7, [#allocation5]
    $region37: #{tpu_custom_call.1} parent=1 // pred_fallthru
      _
    // Predicated region
    $region38: #{tpu_custom_call.1} parent=1 // pred_check
      _
    $region39: #{tpu_custom_call.1} parent=1 // pred_check_branch
      %319 = sbr.rel (0) target = $region41
    $region40: #{tpu_custom_call.1} parent=1 // pred_region
      %320 = dma.done [#allocation5], 16
    $region41: #{tpu_custom_call.1} parent=1 // pred_fallthru
      _
    %321 = vsyncpa [#allocation4], 1
    %322 = vsyncpa [#allocation5], 1

</llo_original>
